<compile_context>
chip_gen: v7x
topology: tpu7x:2x2x1
jax: 0.10.0
libtpu: 0.0.40
codegen_flags: <defaults>
</compile_context>

<pallas_src>
import functools

import jax
import jax.numpy as jnp
from jax.experimental import pallas as pl
from jax.experimental.pallas import tpu as pltpu


def _convt1x1_clamp_kernel(w_ref, b_ref, x_ref, o_ref, *, min_value, max_value):
    """One (batch, HW-tile) block.

    w_ref: VMEM (cout, cin)   pre-transposed weight: w_ref[co, ci]
    b_ref: VMEM (cout, 1)     bias column
    x_ref: VMEM (cin, tile)   lane-dense input slab
    o_ref: VMEM (cout, tile)
    """
    cin = x_ref.shape[0]

    x = x_ref[...].astype(jnp.float32)     # (cin, tile)
    w = w_ref[...].astype(jnp.float32)     # (cout, cin)
    b = b_ref[...].astype(jnp.float32)     # (cout, 1)

    # `cin` full-width FMAs into a (cout, tile) accumulator (VPU only):
    #   (1, tile) row broadcast over sublanes  x  (cout, 1) weight column
    # Bias is folded into the first term.  No concatenate, no MXU.
    acc = x[0:1, :] * w[:, 0:1] + b
    for ci in range(1, cin):
        acc = acc + x[ci:ci + 1, :] * w[:, ci:ci + 1]

    # clamp_min then clamp_max (PyTorch order), single lane-dense store.
    out = jnp.minimum(jnp.maximum(acc, min_value), max_value)
    o_ref[...] = out.astype(o_ref.dtype)


def _cores_per_chip():
    """Best-effort TensorCores-per-chip (v7x has 2); fall back to 1."""
    try:
        kind = jax.devices()[0].device_kind.lower()
        if "v7" in kind:
            return 2
    except Exception:
        pass
    return 1


def _pick_lane_tile(hw, n, cores_per_chip, bytes_per_lane,
                    vmem_budget_bytes=8 << 20):
    """Largest 128-multiple divisor of hw that fits the VMEM budget, split so
    every TensorCore on the chip gets at least one grid block."""
    if hw % 128 != 0:
        return hw                                   # lane-masked fallback
    cap = max(128, (vmem_budget_bytes // max(bytes_per_lane, 1)) // 128 * 128)
    tile = 128
    t = 128
    limit = min(cap, hw)
    while t <= limit:
        if hw % t == 0:
            tile = t
        t += 128
    # Keep >= cores_per_chip parallel grid points (v7x megacore utilization).
    while (n * (hw // tile) < cores_per_chip and tile % 256 == 0
           and hw % (tile // 2) == 0):
        tile //= 2
    return tile


def conv_transpose1x1_pad1_clamp(x, weight, bias, *, min_value=4.7,
                                 max_value=0.3):
    """x: (N, Cin, H, W), weight: (Cin, Cout, 1, 1), bias: (Cout,).

    ConvTranspose2d(k=1, stride=1, padding=1) -> clamp_min -> clamp_max.
    Output spatial size is (H-2, W-2); output pixel (i, j) reads input pixel
    (i+1, j+1).
    """
    n, cin, h, w = x.shape
    cout = weight.shape[1]
    hc, wc = h - 2, w - 2
    hw = h * w

    itemsize = jnp.dtype(x.dtype).itemsize
    bytes_per_lane = itemsize * (cin + cout) * 2        # in+out, double-buffered
    tile = _pick_lane_tile(hw, n, _cores_per_chip(), bytes_per_lane)
    num_tiles = hw // tile

    # Free, contiguous reshape -- no HBM copy, unlike cropping the input.
    x_flat = x.reshape(n, cin, hw)
    # Pre-transpose the weight at trace time (no in-kernel transpose).
    w2d = weight.reshape(cin, cout).T                    # (cout, cin)
    b2d = bias.reshape(cout, 1)                          # (cout, 1)

    cost = pl.CostEstimate(
        flops=2 * n * cout * cin * hw,
        transcendentals=0,
        bytes_accessed=(n * cin * hw + n * cout * hw) * itemsize
        + (cout * cin + cout) * itemsize,
    )

    kernel = functools.partial(
        _convt1x1_clamp_kernel,
        min_value=float(min_value),
        max_value=float(max_value),
    )

    out_full = pl.pallas_call(
        kernel,
        out_shape=jax.ShapeDtypeStruct((n, cout, hw), x.dtype),
        grid_spec=pltpu.PrefetchScalarGridSpec(
            num_scalar_prefetch=0,
            grid=(n, num_tiles),
            in_specs=[
                pl.BlockSpec((cout, cin), lambda b, t: (0, 0)),     # weight
                pl.BlockSpec((cout, 1), lambda b, t: (0, 0)),       # bias
                pl.BlockSpec((None, cin, tile), lambda b, t: (b, 0, t)),
            ],
            out_specs=pl.BlockSpec((None, cout, tile),
                                   lambda b, t: (b, 0, t)),
        ),
        compiler_params=pltpu.CompilerParams(
            dimension_semantics=("parallel", "parallel")),
        cost_estimate=cost,
    )(w2d, b2d, x_flat)

    # Spatial crop of the full-plane result (cheap XLA slice, fuses downstream).
    return out_full.reshape(n, cout, h, w)[:, :, 1:1 + hc, 1:1 + wc]


if __name__ == "__main__":
    key = jax.random.PRNGKey(0)
    kx, kw, kb = jax.random.split(key, 3)

    # Shapes implied by the module: x1 = randn(1, 5, 64, 64).
    N, CIN, H, W = 1, 5, 64, 64
    COUT = 5

    x1 = jax.random.normal(kx, (N, CIN, H, W), dtype=jnp.float32)
    bound = 1.0 / jnp.sqrt(jnp.float32(CIN * 1 * 1))
    weight = jax.random.uniform(kw, (CIN, COUT, 1, 1), jnp.float32,
                                minval=-bound, maxval=bound)
    bias = jax.random.uniform(kb, (COUT,), jnp.float32,
                              minval=-bound, maxval=bound)

    def ref_fn(x, wgt, b, mn, mx):
        xc = x[:, :, 1:-1, 1:-1]
        v1 = jnp.einsum("nchw,ck->nkhw", xc, wgt.reshape(CIN, COUT)) \
             + b.reshape(1, COUT, 1, 1)
        return jnp.minimum(jnp.maximum(v1, mn), mx)

    # 1) Module-default thresholds (degenerate: output is the constant 0.3).
    run_default = jax.jit(functools.partial(conv_transpose1x1_pad1_clamp,
                                            min_value=4.7, max_value=0.3))
    out = run_default(x1, weight, bias)
    jax.block_until_ready(out)
    assert out.shape == (N, COUT, H - 2, W - 2)
    ref = ref_fn(x1, weight, bias, 4.7, 0.3)
    assert jnp.allclose(out, ref, atol=1e-5, rtol=1e-5)

    # 2) Non-degenerate thresholds so the conv + bias path is actually tested.
    run_nd = jax.jit(functools.partial(conv_transpose1x1_pad1_clamp,
                                       min_value=-0.5, max_value=0.5))
    out2 = run_nd(x1, weight, bias)
    jax.block_until_ready(out2)
    ref2 = ref_fn(x1, weight, bias, -0.5, 0.5)
    assert jnp.allclose(out2, ref2, atol=1e-5, rtol=1e-5)

    print("KERNEL_OK")
</pallas_src>

<mosaic_0001>
module attributes {stable_mosaic.version = 11 : i64} {
  func.func @_convt1x1_clamp_kernel(%arg0: i32, %arg1: i32, %arg2: memref<5x5xf32, #tpu.memory_space<vmem>>, %arg3: memref<5x1xf32, #tpu.memory_space<vmem>>, %arg4: memref<1x5x4096xf32, #tpu.memory_space<vmem>>, %arg5: memref<1x5x4096xf32, #tpu.memory_space<vmem>>) attributes {dimension_semantics = [#tpu.dimension_semantics<parallel>, #tpu.dimension_semantics<parallel>], iteration_bounds = array<i64: 1, 1>, scalar_prefetch = 0 : i64, scratch_operands = 0 : i64, tpu.core_type = #tpu.core_type<tc>, window_params = [{pipeline_mode = #tpu.pipeline_mode<synchronous>, transform_indices = @transform_0, window_bounds = array<i64: 5, 5>}, {pipeline_mode = #tpu.pipeline_mode<synchronous>, transform_indices = @transform_1, window_bounds = array<i64: 5, 1>}, {transform_indices = @transform_2, window_bounds = array<i64: 1, 5, 4096>}, {transform_indices = @transform_3, window_bounds = array<i64: 1, 5, 4096>}]} {
    %c0 = arith.constant 0 : index
    %c0_0 = arith.constant 0 : index
    %c0_1 = arith.constant 0 : index
    %0 = vector.load %arg4[%c0, %c0_0, %c0_1] : memref<1x5x4096xf32, #tpu.memory_space<vmem>>, vector<1x5x4096xf32>
    %1 = vector.shape_cast %0 : vector<1x5x4096xf32> to vector<5x4096xf32>
    %c0_2 = arith.constant 0 : index
    %c0_3 = arith.constant 0 : index
    %2 = vector.load %arg2[%c0_2, %c0_3] : memref<5x5xf32, #tpu.memory_space<vmem>>, vector<5x5xf32>
    %c0_4 = arith.constant 0 : index
    %c0_5 = arith.constant 0 : index
    %3 = vector.load %arg3[%c0_4, %c0_5] : memref<5x1xf32, #tpu.memory_space<vmem>>, vector<5x1xf32>
    %4 = vector.extract_strided_slice %1 {offsets = [0, 0], sizes = [1, 4096], strides = [1, 1]} : vector<5x4096xf32> to vector<1x4096xf32>
    %5 = vector.extract_strided_slice %2 {offsets = [0, 0], sizes = [5, 1], strides = [1, 1]} : vector<5x5xf32> to vector<5x1xf32>
    %6 = vector.broadcast %4 : vector<1x4096xf32> to vector<5x4096xf32>
    %7 = vector.broadcast %5 : vector<5x1xf32> to vector<5x4096xf32>
    %8 = arith.mulf %6, %7 : vector<5x4096xf32>
    %9 = vector.broadcast %3 : vector<5x1xf32> to vector<5x4096xf32>
    %10 = arith.addf %8, %9 : vector<5x4096xf32>
    %11 = vector.extract_strided_slice %1 {offsets = [1, 0], sizes = [1, 4096], strides = [1, 1]} : vector<5x4096xf32> to vector<1x4096xf32>
    %12 = vector.extract_strided_slice %2 {offsets = [0, 1], sizes = [5, 1], strides = [1, 1]} : vector<5x5xf32> to vector<5x1xf32>
    %13 = vector.broadcast %11 : vector<1x4096xf32> to vector<5x4096xf32>
    %14 = vector.broadcast %12 : vector<5x1xf32> to vector<5x4096xf32>
    %15 = arith.mulf %13, %14 : vector<5x4096xf32>
    %16 = arith.addf %10, %15 : vector<5x4096xf32>
    %17 = vector.extract_strided_slice %1 {offsets = [2, 0], sizes = [1, 4096], strides = [1, 1]} : vector<5x4096xf32> to vector<1x4096xf32>
    %18 = vector.extract_strided_slice %2 {offsets = [0, 2], sizes = [5, 1], strides = [1, 1]} : vector<5x5xf32> to vector<5x1xf32>
    %19 = vector.broadcast %17 : vector<1x4096xf32> to vector<5x4096xf32>
    %20 = vector.broadcast %18 : vector<5x1xf32> to vector<5x4096xf32>
    %21 = arith.mulf %19, %20 : vector<5x4096xf32>
    %22 = arith.addf %16, %21 : vector<5x4096xf32>
    %23 = vector.extract_strided_slice %1 {offsets = [3, 0], sizes = [1, 4096], strides = [1, 1]} : vector<5x4096xf32> to vector<1x4096xf32>
    %24 = vector.extract_strided_slice %2 {offsets = [0, 3], sizes = [5, 1], strides = [1, 1]} : vector<5x5xf32> to vector<5x1xf32>
    %25 = vector.broadcast %23 : vector<1x4096xf32> to vector<5x4096xf32>
    %26 = vector.broadcast %24 : vector<5x1xf32> to vector<5x4096xf32>
    %27 = arith.mulf %25, %26 : vector<5x4096xf32>
    %28 = arith.addf %22, %27 : vector<5x4096xf32>
    %29 = vector.extract_strided_slice %1 {offsets = [4, 0], sizes = [1, 4096], strides = [1, 1]} : vector<5x4096xf32> to vector<1x4096xf32>
    %30 = vector.extract_strided_slice %2 {offsets = [0, 4], sizes = [5, 1], strides = [1, 1]} : vector<5x5xf32> to vector<5x1xf32>
    %31 = vector.broadcast %29 : vector<1x4096xf32> to vector<5x4096xf32>
    %32 = vector.broadcast %30 : vector<5x1xf32> to vector<5x4096xf32>
    %33 = arith.mulf %31, %32 : vector<5x4096xf32>
    %34 = arith.addf %28, %33 : vector<5x4096xf32>
    %cst = arith.constant 4.700000e+00 : f32
    %35 = vector.broadcast %cst : f32 to vector<5x4096xf32>
    %36 = arith.maximumf %34, %35 : vector<5x4096xf32>
    %cst_6 = arith.constant 3.000000e-01 : f32
    %37 = vector.broadcast %cst_6 : f32 to vector<5x4096xf32>
    %38 = arith.minimumf %36, %37 : vector<5x4096xf32>
    %c0_7 = arith.constant 0 : index
    %c0_8 = arith.constant 0 : index
    %c0_9 = arith.constant 0 : index
    %39 = vector.load %arg5[%c0_7, %c0_8, %c0_9] : memref<1x5x4096xf32, #tpu.memory_space<vmem>>, vector<1x5x4096xf32>
    %40 = vector.shape_cast %39 : vector<1x5x4096xf32> to vector<5x4096xf32>
    %41 = vector.shape_cast %38 : vector<5x4096xf32> to vector<1x5x4096xf32>
    tpu.vector_store %arg5[%c0_7, %c0_8, %c0_9], %41 {strides = array<i32>} : memref<1x5x4096xf32, #tpu.memory_space<vmem>>, vector<1x5x4096xf32>,
    return
  }
  func.func @transform_0(%arg0: i32, %arg1: i32) -> (i32, i32) {
    %c0_i32 = arith.constant 0 : i32
    %c0_i32_0 = arith.constant 0 : i32
    %c0_i32_1 = arith.constant 0 : i32
    return %c0_i32, %c0_i32_0 : i32, i32
  }
  func.func @transform_1(%arg0: i32, %arg1: i32) -> (i32, i32) {
    %c0_i32 = arith.constant 0 : i32
    %c0_i32_0 = arith.constant 0 : i32
    %c0_i32_1 = arith.constant 0 : i32
    return %c0_i32, %c0_i32_0 : i32, i32
  }
  func.func @transform_2(%arg0: i32, %arg1: i32) -> (i32, i32, i32) {
    %c0_i32 = arith.constant 0 : i32
    %c0_i32_0 = arith.constant 0 : i32
    return %arg0, %c0_i32, %arg1 : i32, i32, i32
  }
  func.func @transform_3(%arg0: i32, %arg1: i32) -> (i32, i32, i32) {
    %c0_i32 = arith.constant 0 : i32
    %c0_i32_0 = arith.constant 0 : i32
    return %arg0, %c0_i32, %arg1 : i32, i32, i32
  }
}

</mosaic_0001>

<llo_original>
// kernel: conv_transpose1x1_pad1_clamp.1
$region0: #{conv_transpose1x1_pad1_clamp.1}
  #allocation0 [shape = 'u32[]', space=smem, size = 0x4, offset = 0x4, fixed_abs, tag = 'smem constant byte address 0x4 - core index']
  #allocation1 [shape = 'u32[144,128]{1,0:T(1,128)}', space=vmem, size = 0x12000, scoped, tag = 'internal scratch']
  %s0 = inlined_call_operand.vmem [shape: f32[5,5], index: 0, kind: input, shape index: {}]
  %s1 = inlined_call_operand.vmem [shape: f32[5,1], index: 1, kind: input, shape index: {}]
  %s2 = inlined_call_operand.vmem [shape: f32[1,5,4096], index: 2, kind: input, shape index: {}]
  %s3 = inlined_call_operand.vmem [shape: f32[1,5,4096], index: 3, kind: output, shape index: {}]
  %s4 = sld [smem:[#allocation0]]
  $region22: #{conv_transpose1x1_pad1_clamp.1} parent=0
    _
  %s6 = ssub.s32 1, %s4
  %s7 = scalar_select 0, %s6, %s4
  // Predicated region
  $region2: #{conv_transpose1x1_pad1_clamp.1} parent=0 // pred_check
    _
  $region3: #{conv_transpose1x1_pad1_clamp.1} parent=0 // pred_check_branch
    %9 = sbr.rel (0) target = $region5
  $region4: #{conv_transpose1x1_pad1_clamp.1} parent=0 // pred_region
    _
  $region5: #{conv_transpose1x1_pad1_clamp.1} parent=0 // pred_fallthru
    _
  // Predicated region
  $region6: #{conv_transpose1x1_pad1_clamp.1} parent=0 // pred_check
    _
  $region7: #{conv_transpose1x1_pad1_clamp.1} parent=0 // pred_check_branch
    %11 = sbr.rel (0) target = $region9
  $region8: #{conv_transpose1x1_pad1_clamp.1} parent=0 // pred_region
    _
  $region9: #{conv_transpose1x1_pad1_clamp.1} parent=0 // pred_fallthru
    _
  // Predicated region
  $region10: #{conv_transpose1x1_pad1_clamp.1} parent=0 // pred_check
    _
  $region11: #{conv_transpose1x1_pad1_clamp.1} parent=0 // pred_check_branch
    %13 = sbr.rel (0) target = $region13
  $region12: #{conv_transpose1x1_pad1_clamp.1} parent=0 // pred_region
    _
  $region13: #{conv_transpose1x1_pad1_clamp.1} parent=0 // pred_fallthru
    _
  %v14 = vld [vmem:[%s2] sm:$0x1f]
  %v15 = vld [vmem:[%s2 + $0x8] sm:$0x1f]
  %v16 = vld [vmem:[%s2 + $0x10] sm:$0x1f]
  %v17 = vld [vmem:[%s2 + $0x18] sm:$0x1f]
  %v18 = vld [vmem:[%s2 + $0x20] sm:$0x1f]
  %v19 = vld [vmem:[%s2 + $0x28] sm:$0x1f]
  %v20 = vld [vmem:[%s2 + $0x30] sm:$0x1f]
  %v21 = vld [vmem:[%s2 + $0x38] sm:$0x1f]
  %v22 = vld [vmem:[%s2 + $0x40] sm:$0x1f]
  %v23 = vld [vmem:[%s2 + $0x48] sm:$0x1f]
  %v24 = vld [vmem:[%s2 + $0x50] sm:$0x1f]
  %v25 = vld [vmem:[%s2 + $0x58] sm:$0x1f]
  %v26 = vld [vmem:[%s2 + $0x60] sm:$0x1f]
  %v27 = vld [vmem:[%s2 + $0x68] sm:$0x1f]
  %v28 = vld [vmem:[%s2 + $0x70] sm:$0x1f]
  %v29 = vld [vmem:[%s2 + $0x78] sm:$0x1f]
  %v30 = vld [vmem:[%s2 + $0x80] sm:$0x1f]
  %v31 = vld [vmem:[%s2 + $0x88] sm:$0x1f]
  %v32 = vld [vmem:[%s2 + $0x90] sm:$0x1f]
  %v33 = vld [vmem:[%s2 + $0x98] sm:$0x1f]
  %v34 = vld [vmem:[%s2 + $0xa0] sm:$0x1f]
  %v35 = vld [vmem:[%s2 + $0xa8] sm:$0x1f]
  %v36 = vld [vmem:[%s2 + $0xb0] sm:$0x1f]
  %v37 = vld [vmem:[%s2 + $0xb8] sm:$0x1f]
  %v38 = vld [vmem:[%s2 + $0xc0] sm:$0x1f]
  %v39 = vld [vmem:[%s2 + $0xc8] sm:$0x1f]
  %v40 = vld [vmem:[%s2 + $0xd0] sm:$0x1f]
  %v41 = vld [vmem:[%s2 + $0xd8] sm:$0x1f]
  %v42 = vld [vmem:[%s2 + $0xe0] sm:$0x1f]
  %v43 = vld [vmem:[%s2 + $0xe8] sm:$0x1f]
  %v44 = vld [vmem:[%s2 + $0xf0] sm:$0x1f]
  %v45 = vld [vmem:[%s2 + $0xf8] sm:$0x1f]
  %v46 = vld [vmem:[%s0] sm:$0x1f]
  %v47 = vld [vmem:[%s1] sm:$0x1f]
  %v48 = vlaneseq
  %v49 = vshrl.u32 %v48, 7
  %v50 = vsub.s32 0, %v49
  %v51 = vrot.slane %v14, %v50
  %v52 = vlaneseq
  %v53 = vshrl.u32 %v52, 7
  %v54 = vsub.s32 0, %v53
  %v55 = vrot.slane %v15, %v54
  %v56 = vlaneseq
  %v57 = vshrl.u32 %v56, 7
  %v58 = vsub.s32 0, %v57
  %v59 = vrot.slane %v16, %v58
  %v60 = vlaneseq
  %v61 = vshrl.u32 %v60, 7
  %v62 = vsub.s32 0, %v61
  %v63 = vrot.slane %v17, %v62
  %v64 = vlaneseq
  %v65 = vshrl.u32 %v64, 7
  %v66 = vsub.s32 0, %v65
  %v67 = vrot.slane %v18, %v66
  %v68 = vlaneseq
  %v69 = vshrl.u32 %v68, 7
  %v70 = vsub.s32 0, %v69
  %v71 = vrot.slane %v19, %v70
  %v72 = vlaneseq
  %v73 = vshrl.u32 %v72, 7
  %v74 = vsub.s32 0, %v73
  %v75 = vrot.slane %v20, %v74
  %v76 = vlaneseq
  %v77 = vshrl.u32 %v76, 7
  %v78 = vsub.s32 0, %v77
  %v79 = vrot.slane %v21, %v78
  %v80 = vlaneseq
  %v81 = vshrl.u32 %v80, 7
  %v82 = vsub.s32 0, %v81
  %v83 = vrot.slane %v22, %v82
  %v84 = vlaneseq
  %v85 = vshrl.u32 %v84, 7
  %v86 = vsub.s32 0, %v85
  %v87 = vrot.slane %v23, %v86
  %v88 = vlaneseq
  %v89 = vshrl.u32 %v88, 7
  %v90 = vsub.s32 0, %v89
  %v91 = vrot.slane %v24, %v90
  %v92 = vlaneseq
  %v93 = vshrl.u32 %v92, 7
  %v94 = vsub.s32 0, %v93
  %v95 = vrot.slane %v25, %v94
  %v96 = vlaneseq
  %v97 = vshrl.u32 %v96, 7
  %v98 = vsub.s32 0, %v97
  %v99 = vrot.slane %v26, %v98
  %v100 = vlaneseq
  %v101 = vshrl.u32 %v100, 7
  %v102 = vsub.s32 0, %v101
  %v103 = vrot.slane %v27, %v102
  %v104 = vlaneseq
  %v105 = vshrl.u32 %v104, 7
  %v106 = vsub.s32 0, %v105
  %v107 = vrot.slane %v28, %v106
  %v108 = vlaneseq
  %v109 = vshrl.u32 %v108, 7
  %v110 = vsub.s32 0, %v109
  %v111 = vrot.slane %v29, %v110
  %v112 = vlaneseq
  %v113 = vshrl.u32 %v112, 7
  %v114 = vsub.s32 0, %v113
  %v115 = vrot.slane %v30, %v114
  %v116 = vlaneseq
  %v117 = vshrl.u32 %v116, 7
  %v118 = vsub.s32 0, %v117
  %v119 = vrot.slane %v31, %v118
  %v120 = vlaneseq
  %v121 = vshrl.u32 %v120, 7
  %v122 = vsub.s32 0, %v121
  %v123 = vrot.slane %v32, %v122
  %v124 = vlaneseq
  %v125 = vshrl.u32 %v124, 7
  %v126 = vsub.s32 0, %v125
  %v127 = vrot.slane %v33, %v126
  %v128 = vlaneseq
  %v129 = vshrl.u32 %v128, 7
  %v130 = vsub.s32 0, %v129
  %v131 = vrot.slane %v34, %v130
  %v132 = vlaneseq
  %v133 = vshrl.u32 %v132, 7
  %v134 = vsub.s32 0, %v133
  %v135 = vrot.slane %v35, %v134
  %v136 = vlaneseq
  %v137 = vshrl.u32 %v136, 7
  %v138 = vsub.s32 0, %v137
  %v139 = vrot.slane %v36, %v138
  %v140 = vlaneseq
  %v141 = vshrl.u32 %v140, 7
  %v142 = vsub.s32 0, %v141
  %v143 = vrot.slane %v37, %v142
  %v144 = vlaneseq
  %v145 = vshrl.u32 %v144, 7
  %v146 = vsub.s32 0, %v145
  %v147 = vrot.slane %v38, %v146
  %v148 = vlaneseq
  %v149 = vshrl.u32 %v148, 7
  %v150 = vsub.s32 0, %v149
  %v151 = vrot.slane %v39, %v150
  %v152 = vlaneseq
  %v153 = vshrl.u32 %v152, 7
  %v154 = vsub.s32 0, %v153
  %v155 = vrot.slane %v40, %v154
  %v156 = vlaneseq
  %v157 = vshrl.u32 %v156, 7
  %v158 = vsub.s32 0, %v157
  %v159 = vrot.slane %v41, %v158
  %v160 = vlaneseq
  %v161 = vshrl.u32 %v160, 7
  %v162 = vsub.s32 0, %v161
  %v163 = vrot.slane %v42, %v162
  %v164 = vlaneseq
  %v165 = vshrl.u32 %v164, 7
  %v166 = vsub.s32 0, %v165
  %v167 = vrot.slane %v43, %v166
  %v168 = vlaneseq
  %v169 = vshrl.u32 %v168, 7
  %v170 = vsub.s32 0, %v169
  %v171 = vrot.slane %v44, %v170
  %v172 = vlaneseq
  %v173 = vshrl.u32 %v172, 7
  %v174 = vsub.s32 0, %v173
  %v175 = vrot.slane %v45, %v174
  %177 = vset.pattern.permute.xlu0 0
  %178 = vperm.xlu0 %177, %v46
  %v179 = vpop.permute.xlu0 %178
  %v181 = vmul.f32 %v51, %v179
  %v182 = vmul.f32 %v55, %v179
  %v183 = vmul.f32 %v59, %v179
  %v184 = vmul.f32 %v63, %v179
  %v185 = vmul.f32 %v67, %v179
  %v186 = vmul.f32 %v71, %v179
  %v187 = vmul.f32 %v75, %v179
  %v188 = vmul.f32 %v79, %v179
  %v189 = vmul.f32 %v83, %v179
  %v190 = vmul.f32 %v87, %v179
  %v191 = vmul.f32 %v91, %v179
  %v192 = vmul.f32 %v95, %v179
  %v193 = vmul.f32 %v99, %v179
  %v194 = vmul.f32 %v103, %v179
  %v195 = vmul.f32 %v107, %v179
  %v196 = vmul.f32 %v111, %v179
  %v197 = vmul.f32 %v115, %v179
  %v198 = vmul.f32 %v119, %v179
  %v199 = vmul.f32 %v123, %v179
  %v200 = vmul.f32 %v127, %v179
  %v201 = vmul.f32 %v131, %v179
  %v202 = vmul.f32 %v135, %v179
  %v203 = vmul.f32 %v139, %v179
  %v204 = vmul.f32 %v143, %v179
  %v205 = vmul.f32 %v147, %v179
  %v206 = vmul.f32 %v151, %v179
  %v207 = vmul.f32 %v155, %v179
  %v208 = vmul.f32 %v159, %v179
  %v209 = vmul.f32 %v163, %v179
  %v210 = vmul.f32 %v167, %v179
  %v211 = vmul.f32 %v171, %v179
  %v212 = vmul.f32 %v175, %v179
  %214 = vset.pattern.permute.xlu0 0
  %215 = vperm.xlu0 %214, %v47
  %v216 = vpop.permute.xlu0 %215
  %v218 = vadd.f32 %v181, %v216
  %v219 = vadd.f32 %v182, %v216
  %v220 = vadd.f32 %v183, %v216
  %v221 = vadd.f32 %v184, %v216
  %v222 = vadd.f32 %v185, %v216
  %v223 = vadd.f32 %v186, %v216
  %v224 = vadd.f32 %v187, %v216
  %v225 = vadd.f32 %v188, %v216
  %v226 = vadd.f32 %v189, %v216
  %v227 = vadd.f32 %v190, %v216
  %v228 = vadd.f32 %v191, %v216
  %v229 = vadd.f32 %v192, %v216
  %v230 = vadd.f32 %v193, %v216
  %v231 = vadd.f32 %v194, %v216
  %v232 = vadd.f32 %v195, %v216
  %v233 = vadd.f32 %v196, %v216
  %v234 = vadd.f32 %v197, %v216
  %v235 = vadd.f32 %v198, %v216
  %v236 = vadd.f32 %v199, %v216
  %v237 = vadd.f32 %v200, %v216
  %v238 = vadd.f32 %v201, %v216
  %v239 = vadd.f32 %v202, %v216
  %v240 = vadd.f32 %v203, %v216
  %v241 = vadd.f32 %v204, %v216
  %v242 = vadd.f32 %v205, %v216
  %v243 = vadd.f32 %v206, %v216
  %v244 = vadd.f32 %v207, %v216
  %v245 = vadd.f32 %v208, %v216
  %v246 = vadd.f32 %v209, %v216
  %v247 = vadd.f32 %v210, %v216
  %v248 = vadd.f32 %v211, %v216
  %v249 = vadd.f32 %v212, %v216
  %v250 = vlaneseq
  %v251 = vshrl.u32 %v250, 7
  %v252 = vsub.s32 1, %v251
  %v253 = vrot.slane %v14, %v252
  %v254 = vlaneseq
  %v255 = vshrl.u32 %v254, 7
  %v256 = vsub.s32 1, %v255
  %v257 = vrot.slane %v15, %v256
  %v258 = vlaneseq
  %v259 = vshrl.u32 %v258, 7
  %v260 = vsub.s32 1, %v259
  %v261 = vrot.slane %v16, %v260
  %v262 = vlaneseq
  %v263 = vshrl.u32 %v262, 7
  %v264 = vsub.s32 1, %v263
  %v265 = vrot.slane %v17, %v264
  %v266 = vlaneseq
  %v267 = vshrl.u32 %v266, 7
  %v268 = vsub.s32 1, %v267
  %v269 = vrot.slane %v18, %v268
  %v270 = vlaneseq
  %v271 = vshrl.u32 %v270, 7
  %v272 = vsub.s32 1, %v271
  %v273 = vrot.slane %v19, %v272
  %v274 = vlaneseq
  %v275 = vshrl.u32 %v274, 7
  %v276 = vsub.s32 1, %v275
  %v277 = vrot.slane %v20, %v276
  %v278 = vlaneseq
  %v279 = vshrl.u32 %v278, 7
  %v280 = vsub.s32 1, %v279
  %v281 = vrot.slane %v21, %v280
  %v282 = vlaneseq
  %v283 = vshrl.u32 %v282, 7
  %v284 = vsub.s32 1, %v283
  %v285 = vrot.slane %v22, %v284
  %v286 = vlaneseq
  %v287 = vshrl.u32 %v286, 7
  %v288 = vsub.s32 1, %v287
  %v289 = vrot.slane %v23, %v288
  %v290 = vlaneseq
  %v291 = vshrl.u32 %v290, 7
  %v292 = vsub.s32 1, %v291
  %v293 = vrot.slane %v24, %v292
  %v294 = vlaneseq
  %v295 = vshrl.u32 %v294, 7
  %v296 = vsub.s32 1, %v295
  %v297 = vrot.slane %v25, %v296
  %v298 = vlaneseq
  %v299 = vshrl.u32 %v298, 7
  %v300 = vsub.s32 1, %v299
  %v301 = vrot.slane %v26, %v300
  %v302 = vlaneseq
  %v303 = vshrl.u32 %v302, 7
  %v304 = vsub.s32 1, %v303
  %v305 = vrot.slane %v27, %v304
  %v306 = vlaneseq
  %v307 = vshrl.u32 %v306, 7
  %v308 = vsub.s32 1, %v307
  %v309 = vrot.slane %v28, %v308
  %v310 = vlaneseq
  %v311 = vshrl.u32 %v310, 7
  %v312 = vsub.s32 1, %v311
  %v313 = vrot.slane %v29, %v312
  %v314 = vlaneseq
  %v315 = vshrl.u32 %v314, 7
  %v316 = vsub.s32 1, %v315
  %v317 = vrot.slane %v30, %v316
  %v318 = vlaneseq
  %v319 = vshrl.u32 %v318, 7
  %v320 = vsub.s32 1, %v319
  %v321 = vrot.slane %v31, %v320
  %v322 = vlaneseq
  %v323 = vshrl.u32 %v322, 7
  %v324 = vsub.s32 1, %v323
  %v325 = vrot.slane %v32, %v324
  %v326 = vlaneseq
  %v327 = vshrl.u32 %v326, 7
  %v328 = vsub.s32 1, %v327
  %v329 = vrot.slane %v33, %v328
  %v330 = vlaneseq
  %v331 = vshrl.u32 %v330, 7
  %v332 = vsub.s32 1, %v331
  %v333 = vrot.slane %v34, %v332
  %v334 = vlaneseq
  %v335 = vshrl.u32 %v334, 7
  %v336 = vsub.s32 1, %v335
  %v337 = vrot.slane %v35, %v336
  %v338 = vlaneseq
  %v339 = vshrl.u32 %v338, 7
  %v340 = vsub.s32 1, %v339
  %v341 = vrot.slane %v36, %v340
  %v342 = vlaneseq
  %v343 = vshrl.u32 %v342, 7
  %v344 = vsub.s32 1, %v343
  %v345 = vrot.slane %v37, %v344
  %v346 = vlaneseq
  %v347 = vshrl.u32 %v346, 7
  %v348 = vsub.s32 1, %v347
  %v349 = vrot.slane %v38, %v348
  %v350 = vlaneseq
  %v351 = vshrl.u32 %v350, 7
  %v352 = vsub.s32 1, %v351
  %v353 = vrot.slane %v39, %v352
  %v354 = vlaneseq
  %v355 = vshrl.u32 %v354, 7
  %v356 = vsub.s32 1, %v355
  %v357 = vrot.slane %v40, %v356
  %v358 = vlaneseq
  %v359 = vshrl.u32 %v358, 7
  %v360 = vsub.s32 1, %v359
  %v361 = vrot.slane %v41, %v360
  %v362 = vlaneseq
  %v363 = vshrl.u32 %v362, 7
  %v364 = vsub.s32 1, %v363
  %v365 = vrot.slane %v42, %v364
  %v366 = vlaneseq
  %v367 = vshrl.u32 %v366, 7
  %v368 = vsub.s32 1, %v367
  %v369 = vrot.slane %v43, %v368
  %v370 = vlaneseq
  %v371 = vshrl.u32 %v370, 7
  %v372 = vsub.s32 1, %v371
  %v373 = vrot.slane %v44, %v372
  %v374 = vlaneseq
  %v375 = vshrl.u32 %v374, 7
  %v376 = vsub.s32 1, %v375
  %v377 = vrot.slane %v45, %v376
  %378 = vset.pattern.permute.xlu0 1
  %379 = vperm.xlu0 %378, %v46
  %v380 = vpop.permute.xlu0 %379
  %v382 = vmul.f32 %v253, %v380
  %v383 = vmul.f32 %v257, %v380
  %v384 = vmul.f32 %v261, %v380
  %v385 = vmul.f32 %v265, %v380
  %v386 = vmul.f32 %v269, %v380
  %v387 = vmul.f32 %v273, %v380
  %v388 = vmul.f32 %v277, %v380
  %v389 = vmul.f32 %v281, %v380
  %v390 = vmul.f32 %v285, %v380
  %v391 = vmul.f32 %v289, %v380
  %v392 = vmul.f32 %v293, %v380
  %v393 = vmul.f32 %v297, %v380
  %v394 = vmul.f32 %v301, %v380
  %v395 = vmul.f32 %v305, %v380
  %v396 = vmul.f32 %v309, %v380
  %v397 = vmul.f32 %v313, %v380
  %v398 = vmul.f32 %v317, %v380
  %v399 = vmul.f32 %v321, %v380
  %v400 = vmul.f32 %v325, %v380
  %v401 = vmul.f32 %v329, %v380
  %v402 = vmul.f32 %v333, %v380
  %v403 = vmul.f32 %v337, %v380
  %v404 = vmul.f32 %v341, %v380
  %v405 = vmul.f32 %v345, %v380
  %v406 = vmul.f32 %v349, %v380
  %v407 = vmul.f32 %v353, %v380
  %v408 = vmul.f32 %v357, %v380
  %v409 = vmul.f32 %v361, %v380
  %v410 = vmul.f32 %v365, %v380
  %v411 = vmul.f32 %v369, %v380
  %v412 = vmul.f32 %v373, %v380
  %v413 = vmul.f32 %v377, %v380
  %v414 = vadd.f32 %v218, %v382
  %v415 = vadd.f32 %v219, %v383
  %v416 = vadd.f32 %v220, %v384
  %v417 = vadd.f32 %v221, %v385
  %v418 = vadd.f32 %v222, %v386
  %v419 = vadd.f32 %v223, %v387
  %v420 = vadd.f32 %v224, %v388
  %v421 = vadd.f32 %v225, %v389
  %v422 = vadd.f32 %v226, %v390
  %v423 = vadd.f32 %v227, %v391
  %v424 = vadd.f32 %v228, %v392
  %v425 = vadd.f32 %v229, %v393
  %v426 = vadd.f32 %v230, %v394
  %v427 = vadd.f32 %v231, %v395
  %v428 = vadd.f32 %v232, %v396
  %v429 = vadd.f32 %v233, %v397
  %v430 = vadd.f32 %v234, %v398
  %v431 = vadd.f32 %v235, %v399
  %v432 = vadd.f32 %v236, %v400
  %v433 = vadd.f32 %v237, %v401
  %v434 = vadd.f32 %v238, %v402
  %v435 = vadd.f32 %v239, %v403
  %v436 = vadd.f32 %v240, %v404
  %v437 = vadd.f32 %v241, %v405
  %v438 = vadd.f32 %v242, %v406
  %v439 = vadd.f32 %v243, %v407
  %v440 = vadd.f32 %v244, %v408
  %v441 = vadd.f32 %v245, %v409
  %v442 = vadd.f32 %v246, %v410
  %v443 = vadd.f32 %v247, %v411
  %v444 = vadd.f32 %v248, %v412
  %v445 = vadd.f32 %v249, %v413
  %v446 = vlaneseq
  %v447 = vshrl.u32 %v446, 7
  %v448 = vsub.s32 2, %v447
  %v449 = vrot.slane %v14, %v448
  %v450 = vlaneseq
  %v451 = vshrl.u32 %v450, 7
  %v452 = vsub.s32 2, %v451
  %v453 = vrot.slane %v15, %v452
  %v454 = vlaneseq
  %v455 = vshrl.u32 %v454, 7
  %v456 = vsub.s32 2, %v455
  %v457 = vrot.slane %v16, %v456
  %v458 = vlaneseq
  %v459 = vshrl.u32 %v458, 7
  %v460 = vsub.s32 2, %v459
  %v461 = vrot.slane %v17, %v460
  %v462 = vlaneseq
  %v463 = vshrl.u32 %v462, 7
  %v464 = vsub.s32 2, %v463
  %v465 = vrot.slane %v18, %v464
  %v466 = vlaneseq
  %v467 = vshrl.u32 %v466, 7
  %v468 = vsub.s32 2, %v467
  %v469 = vrot.slane %v19, %v468
  %v470 = vlaneseq
  %v471 = vshrl.u32 %v470, 7
  %v472 = vsub.s32 2, %v471
  %v473 = vrot.slane %v20, %v472
  %v474 = vlaneseq
  %v475 = vshrl.u32 %v474, 7
  %v476 = vsub.s32 2, %v475
  %v477 = vrot.slane %v21, %v476
  %v478 = vlaneseq
  %v479 = vshrl.u32 %v478, 7
  %v480 = vsub.s32 2, %v479
  %v481 = vrot.slane %v22, %v480
  %v482 = vlaneseq
  %v483 = vshrl.u32 %v482, 7
  %v484 = vsub.s32 2, %v483
  %v485 = vrot.slane %v23, %v484
  %v486 = vlaneseq
  %v487 = vshrl.u32 %v486, 7
  %v488 = vsub.s32 2, %v487
  %v489 = vrot.slane %v24, %v488
  %v490 = vlaneseq
  %v491 = vshrl.u32 %v490, 7
  %v492 = vsub.s32 2, %v491
  %v493 = vrot.slane %v25, %v492
  %v494 = vlaneseq
  %v495 = vshrl.u32 %v494, 7
  %v496 = vsub.s32 2, %v495
  %v497 = vrot.slane %v26, %v496
  %v498 = vlaneseq
  %v499 = vshrl.u32 %v498, 7
  %v500 = vsub.s32 2, %v499
  %v501 = vrot.slane %v27, %v500
  %v502 = vlaneseq
  %v503 = vshrl.u32 %v502, 7
  %v504 = vsub.s32 2, %v503
  %v505 = vrot.slane %v28, %v504
  %v506 = vlaneseq
  %v507 = vshrl.u32 %v506, 7
  %v508 = vsub.s32 2, %v507
  %v509 = vrot.slane %v29, %v508
  %v510 = vlaneseq
  %v511 = vshrl.u32 %v510, 7
  %v512 = vsub.s32 2, %v511
  %v513 = vrot.slane %v30, %v512
  %v514 = vlaneseq
  %v515 = vshrl.u32 %v514, 7
  %v516 = vsub.s32 2, %v515
  %v517 = vrot.slane %v31, %v516
  %v518 = vlaneseq
  %v519 = vshrl.u32 %v518, 7
  %v520 = vsub.s32 2, %v519
  %v521 = vrot.slane %v32, %v520
  %v522 = vlaneseq
  %v523 = vshrl.u32 %v522, 7
  %v524 = vsub.s32 2, %v523
  %v525 = vrot.slane %v33, %v524
  %v526 = vlaneseq
  %v527 = vshrl.u32 %v526, 7
  %v528 = vsub.s32 2, %v527
  %v529 = vrot.slane %v34, %v528
  %v530 = vlaneseq
  %v531 = vshrl.u32 %v530, 7
  %v532 = vsub.s32 2, %v531
  %v533 = vrot.slane %v35, %v532
  %v534 = vlaneseq
  %v535 = vshrl.u32 %v534, 7
  %v536 = vsub.s32 2, %v535
  %v537 = vrot.slane %v36, %v536
  %v538 = vlaneseq
  %v539 = vshrl.u32 %v538, 7
  %v540 = vsub.s32 2, %v539
  %v541 = vrot.slane %v37, %v540
  %v542 = vlaneseq
  %v543 = vshrl.u32 %v542, 7
  %v544 = vsub.s32 2, %v543
  %v545 = vrot.slane %v38, %v544
  %v546 = vlaneseq
  %v547 = vshrl.u32 %v546, 7
  %v548 = vsub.s32 2, %v547
  %v549 = vrot.slane %v39, %v548
  %v550 = vlaneseq
  %v551 = vshrl.u32 %v550, 7
  %v552 = vsub.s32 2, %v551
  %v553 = vrot.slane %v40, %v552
  %v554 = vlaneseq
  %v555 = vshrl.u32 %v554, 7
  %v556 = vsub.s32 2, %v555
  %v557 = vrot.slane %v41, %v556
  %v558 = vlaneseq
  %v559 = vshrl.u32 %v558, 7
  %v560 = vsub.s32 2, %v559
  %v561 = vrot.slane %v42, %v560
  %v562 = vlaneseq
  %v563 = vshrl.u32 %v562, 7
  %v564 = vsub.s32 2, %v563
  %v565 = vrot.slane %v43, %v564
  %v566 = vlaneseq
  %v567 = vshrl.u32 %v566, 7
  %v568 = vsub.s32 2, %v567
  %v569 = vrot.slane %v44, %v568
  %v570 = vlaneseq
  %v571 = vshrl.u32 %v570, 7
  %v572 = vsub.s32 2, %v571
  %v573 = vrot.slane %v45, %v572
  %574 = vset.pattern.permute.xlu0 2
  %575 = vperm.xlu0 %574, %v46
  %v576 = vpop.permute.xlu0 %575
  %v578 = vmul.f32 %v449, %v576
  %v579 = vmul.f32 %v453, %v576
  %v580 = vmul.f32 %v457, %v576
  %v581 = vmul.f32 %v461, %v576
  %v582 = vmul.f32 %v465, %v576
  %v583 = vmul.f32 %v469, %v576
  %v584 = vmul.f32 %v473, %v576
  %v585 = vmul.f32 %v477, %v576
  %v586 = vmul.f32 %v481, %v576
  %v587 = vmul.f32 %v485, %v576
  %v588 = vmul.f32 %v489, %v576
  %v589 = vmul.f32 %v493, %v576
  %v590 = vmul.f32 %v497, %v576
  %v591 = vmul.f32 %v501, %v576
  %v592 = vmul.f32 %v505, %v576
  %v593 = vmul.f32 %v509, %v576
  %v594 = vmul.f32 %v513, %v576
  %v595 = vmul.f32 %v517, %v576
  %v596 = vmul.f32 %v521, %v576
  %v597 = vmul.f32 %v525, %v576
  %v598 = vmul.f32 %v529, %v576
  %v599 = vmul.f32 %v533, %v576
  %v600 = vmul.f32 %v537, %v576
  %v601 = vmul.f32 %v541, %v576
  %v602 = vmul.f32 %v545, %v576
  %v603 = vmul.f32 %v549, %v576
  %v604 = vmul.f32 %v553, %v576
  %v605 = vmul.f32 %v557, %v576
  %v606 = vmul.f32 %v561, %v576
  %v607 = vmul.f32 %v565, %v576
  %v608 = vmul.f32 %v569, %v576
  %v609 = vmul.f32 %v573, %v576
  %v610 = vadd.f32 %v414, %v578
  %v611 = vadd.f32 %v415, %v579
  %v612 = vadd.f32 %v416, %v580
  %v613 = vadd.f32 %v417, %v581
  %v614 = vadd.f32 %v418, %v582
  %v615 = vadd.f32 %v419, %v583
  %v616 = vadd.f32 %v420, %v584
  %v617 = vadd.f32 %v421, %v585
  %v618 = vadd.f32 %v422, %v586
  %v619 = vadd.f32 %v423, %v587
  %v620 = vadd.f32 %v424, %v588
  %v621 = vadd.f32 %v425, %v589
  %v622 = vadd.f32 %v426, %v590
  %v623 = vadd.f32 %v427, %v591
  %v624 = vadd.f32 %v428, %v592
  %v625 = vadd.f32 %v429, %v593
  %v626 = vadd.f32 %v430, %v594
  %v627 = vadd.f32 %v431, %v595
  %v628 = vadd.f32 %v432, %v596
  %v629 = vadd.f32 %v433, %v597
  %v630 = vadd.f32 %v434, %v598
  %v631 = vadd.f32 %v435, %v599
  %v632 = vadd.f32 %v436, %v600
  %v633 = vadd.f32 %v437, %v601
  %v634 = vadd.f32 %v438, %v602
  %v635 = vadd.f32 %v439, %v603
  %v636 = vadd.f32 %v440, %v604
  %v637 = vadd.f32 %v441, %v605
  %v638 = vadd.f32 %v442, %v606
  %v639 = vadd.f32 %v443, %v607
  %v640 = vadd.f32 %v444, %v608
  %v641 = vadd.f32 %v445, %v609
  %v642 = vlaneseq
  %v643 = vshrl.u32 %v642, 7
  %v644 = vsub.s32 3, %v643
  %v645 = vrot.slane %v14, %v644
  %v646 = vlaneseq
  %v647 = vshrl.u32 %v646, 7
  %v648 = vsub.s32 3, %v647
  %v649 = vrot.slane %v15, %v648
  %v650 = vlaneseq
  %v651 = vshrl.u32 %v650, 7
  %v652 = vsub.s32 3, %v651
  %v653 = vrot.slane %v16, %v652
  %v654 = vlaneseq
  %v655 = vshrl.u32 %v654, 7
  %v656 = vsub.s32 3, %v655
  %v657 = vrot.slane %v17, %v656
  %v658 = vlaneseq
  %v659 = vshrl.u32 %v658, 7
  %v660 = vsub.s32 3, %v659
  %v661 = vrot.slane %v18, %v660
  %v662 = vlaneseq
  %v663 = vshrl.u32 %v662, 7
  %v664 = vsub.s32 3, %v663
  %v665 = vrot.slane %v19, %v664
  %v666 = vlaneseq
  %v667 = vshrl.u32 %v666, 7
  %v668 = vsub.s32 3, %v667
  %v669 = vrot.slane %v20, %v668
  %v670 = vlaneseq
  %v671 = vshrl.u32 %v670, 7
  %v672 = vsub.s32 3, %v671
  %v673 = vrot.slane %v21, %v672
  %v674 = vlaneseq
  %v675 = vshrl.u32 %v674, 7
  %v676 = vsub.s32 3, %v675
  %v677 = vrot.slane %v22, %v676
  %v678 = vlaneseq
  %v679 = vshrl.u32 %v678, 7
  %v680 = vsub.s32 3, %v679
  %v681 = vrot.slane %v23, %v680
  %v682 = vlaneseq
  %v683 = vshrl.u32 %v682, 7
  %v684 = vsub.s32 3, %v683
  %v685 = vrot.slane %v24, %v684
  %v686 = vlaneseq
  %v687 = vshrl.u32 %v686, 7
  %v688 = vsub.s32 3, %v687
  %v689 = vrot.slane %v25, %v688
  %v690 = vlaneseq
  %v691 = vshrl.u32 %v690, 7
  %v692 = vsub.s32 3, %v691
  %v693 = vrot.slane %v26, %v692
  %v694 = vlaneseq
  %v695 = vshrl.u32 %v694, 7
  %v696 = vsub.s32 3, %v695
  %v697 = vrot.slane %v27, %v696
  %v698 = vlaneseq
  %v699 = vshrl.u32 %v698, 7
  %v700 = vsub.s32 3, %v699
  %v701 = vrot.slane %v28, %v700
  %v702 = vlaneseq
  %v703 = vshrl.u32 %v702, 7
  %v704 = vsub.s32 3, %v703
  %v705 = vrot.slane %v29, %v704
  %v706 = vlaneseq
  %v707 = vshrl.u32 %v706, 7
  %v708 = vsub.s32 3, %v707
  %v709 = vrot.slane %v30, %v708
  %v710 = vlaneseq
  %v711 = vshrl.u32 %v710, 7
  %v712 = vsub.s32 3, %v711
  %v713 = vrot.slane %v31, %v712
  %v714 = vlaneseq
  %v715 = vshrl.u32 %v714, 7
  %v716 = vsub.s32 3, %v715
  %v717 = vrot.slane %v32, %v716
  %v718 = vlaneseq
  %v719 = vshrl.u32 %v718, 7
  %v720 = vsub.s32 3, %v719
  %v721 = vrot.slane %v33, %v720
  %v722 = vlaneseq
  %v723 = vshrl.u32 %v722, 7
  %v724 = vsub.s32 3, %v723
  %v725 = vrot.slane %v34, %v724
  %v726 = vlaneseq
  %v727 = vshrl.u32 %v726, 7
  %v728 = vsub.s32 3, %v727
  %v729 = vrot.slane %v35, %v728
  %v730 = vlaneseq
  %v731 = vshrl.u32 %v730, 7
  %v732 = vsub.s32 3, %v731
  %v733 = vrot.slane %v36, %v732
  %v734 = vlaneseq
  %v735 = vshrl.u32 %v734, 7
  %v736 = vsub.s32 3, %v735
  %v737 = vrot.slane %v37, %v736
  %v738 = vlaneseq
  %v739 = vshrl.u32 %v738, 7
  %v740 = vsub.s32 3, %v739
  %v741 = vrot.slane %v38, %v740
  %v742 = vlaneseq
  %v743 = vshrl.u32 %v742, 7
  %v744 = vsub.s32 3, %v743
  %v745 = vrot.slane %v39, %v744
  %v746 = vlaneseq
  %v747 = vshrl.u32 %v746, 7
  %v748 = vsub.s32 3, %v747
  %v749 = vrot.slane %v40, %v748
  %v750 = vlaneseq
  %v751 = vshrl.u32 %v750, 7
  %v752 = vsub.s32 3, %v751
  %v753 = vrot.slane %v41, %v752
  %v754 = vlaneseq
  %v755 = vshrl.u32 %v754, 7
  %v756 = vsub.s32 3, %v755
  %v757 = vrot.slane %v42, %v756
  %v758 = vlaneseq
  %v759 = vshrl.u32 %v758, 7
  %v760 = vsub.s32 3, %v759
  %v761 = vrot.slane %v43, %v760
  %v762 = vlaneseq
  %v763 = vshrl.u32 %v762, 7
  %v764 = vsub.s32 3, %v763
  %v765 = vrot.slane %v44, %v764
  %v766 = vlaneseq
  %v767 = vshrl.u32 %v766, 7
  %v768 = vsub.s32 3, %v767
  %v769 = vrot.slane %v45, %v768
  %770 = vset.pattern.permute.xlu0 3
  %771 = vperm.xlu0 %770, %v46
  %v772 = vpop.permute.xlu0 %771
  %v774 = vmul.f32 %v645, %v772
  %v775 = vmul.f32 %v649, %v772
  %v776 = vmul.f32 %v653, %v772
  %v777 = vmul.f32 %v657, %v772
  %v778 = vmul.f32 %v661, %v772
  %v779 = vmul.f32 %v665, %v772
  %v780 = vmul.f32 %v669, %v772
  %v781 = vmul.f32 %v673, %v772
  %v782 = vmul.f32 %v677, %v772
  %v783 = vmul.f32 %v681, %v772
  %v784 = vmul.f32 %v685, %v772
  %v785 = vmul.f32 %v689, %v772
  %v786 = vmul.f32 %v693, %v772
  %v787 = vmul.f32 %v697, %v772
  %v788 = vmul.f32 %v701, %v772
  %v789 = vmul.f32 %v705, %v772
  %v790 = vmul.f32 %v709, %v772
  %v791 = vmul.f32 %v713, %v772
  %v792 = vmul.f32 %v717, %v772
  %v793 = vmul.f32 %v721, %v772
  %v794 = vmul.f32 %v725, %v772
  %v795 = vmul.f32 %v729, %v772
  %v796 = vmul.f32 %v733, %v772
  %v797 = vmul.f32 %v737, %v772
  %v798 = vmul.f32 %v741, %v772
  %v799 = vmul.f32 %v745, %v772
  %v800 = vmul.f32 %v749, %v772
  %v801 = vmul.f32 %v753, %v772
  %v802 = vmul.f32 %v757, %v772
  %v803 = vmul.f32 %v761, %v772
  %v804 = vmul.f32 %v765, %v772
  %v805 = vmul.f32 %v769, %v772
  %v806 = vadd.f32 %v610, %v774
  %v807 = vadd.f32 %v611, %v775
  %v808 = vadd.f32 %v612, %v776
  %v809 = vadd.f32 %v613, %v777
  %v810 = vadd.f32 %v614, %v778
  %v811 = vadd.f32 %v615, %v779
  %v812 = vadd.f32 %v616, %v780
  %v813 = vadd.f32 %v617, %v781
  %v814 = vadd.f32 %v618, %v782
  %v815 = vadd.f32 %v619, %v783
  %v816 = vadd.f32 %v620, %v784
  %v817 = vadd.f32 %v621, %v785
  %v818 = vadd.f32 %v622, %v786
  %v819 = vadd.f32 %v623, %v787
  %v820 = vadd.f32 %v624, %v788
  %v821 = vadd.f32 %v625, %v789
  %v822 = vadd.f32 %v626, %v790
  %v823 = vadd.f32 %v627, %v791
  %v824 = vadd.f32 %v628, %v792
  %v825 = vadd.f32 %v629, %v793
  %v826 = vadd.f32 %v630, %v794
  %v827 = vadd.f32 %v631, %v795
  %v828 = vadd.f32 %v632, %v796
  %v829 = vadd.f32 %v633, %v797
  %v830 = vadd.f32 %v634, %v798
  %v831 = vadd.f32 %v635, %v799
  %v832 = vadd.f32 %v636, %v800
  %v833 = vadd.f32 %v637, %v801
  %v834 = vadd.f32 %v638, %v802
  %v835 = vadd.f32 %v639, %v803
  %v836 = vadd.f32 %v640, %v804
  %v837 = vadd.f32 %v641, %v805
  %v838 = vlaneseq
  %v839 = vshrl.u32 %v838, 7
  %v840 = vsub.s32 4, %v839
  %v841 = vrot.slane %v14, %v840
  %v842 = vlaneseq
  %v843 = vshrl.u32 %v842, 7
  %v844 = vsub.s32 4, %v843
  %v845 = vrot.slane %v15, %v844
  %v846 = vlaneseq
  %v847 = vshrl.u32 %v846, 7
  %v848 = vsub.s32 4, %v847
  %v849 = vrot.slane %v16, %v848
  %v850 = vlaneseq
  %v851 = vshrl.u32 %v850, 7
  %v852 = vsub.s32 4, %v851
  %v853 = vrot.slane %v17, %v852
  %v854 = vlaneseq
  %v855 = vshrl.u32 %v854, 7
  %v856 = vsub.s32 4, %v855
  %v857 = vrot.slane %v18, %v856
  %v858 = vlaneseq
  %v859 = vshrl.u32 %v858, 7
  %v860 = vsub.s32 4, %v859
  %v861 = vrot.slane %v19, %v860
  %v862 = vlaneseq
  %v863 = vshrl.u32 %v862, 7
  %v864 = vsub.s32 4, %v863
  %v865 = vrot.slane %v20, %v864
  %v866 = vlaneseq
  %v867 = vshrl.u32 %v866, 7
  %v868 = vsub.s32 4, %v867
  %v869 = vrot.slane %v21, %v868
  %v870 = vlaneseq
  %v871 = vshrl.u32 %v870, 7
  %v872 = vsub.s32 4, %v871
  %v873 = vrot.slane %v22, %v872
  %v874 = vlaneseq
  %v875 = vshrl.u32 %v874, 7
  %v876 = vsub.s32 4, %v875
  %v877 = vrot.slane %v23, %v876
  %v878 = vlaneseq
  %v879 = vshrl.u32 %v878, 7
  %v880 = vsub.s32 4, %v879
  %v881 = vrot.slane %v24, %v880
  %v882 = vlaneseq
  %v883 = vshrl.u32 %v882, 7
  %v884 = vsub.s32 4, %v883
  %v885 = vrot.slane %v25, %v884
  %v886 = vlaneseq
  %v887 = vshrl.u32 %v886, 7
  %v888 = vsub.s32 4, %v887
  %v889 = vrot.slane %v26, %v888
  %v890 = vlaneseq
  %v891 = vshrl.u32 %v890, 7
  %v892 = vsub.s32 4, %v891
  %v893 = vrot.slane %v27, %v892
  %v894 = vlaneseq
  %v895 = vshrl.u32 %v894, 7
  %v896 = vsub.s32 4, %v895
  %v897 = vrot.slane %v28, %v896
  %v898 = vlaneseq
  %v899 = vshrl.u32 %v898, 7
  %v900 = vsub.s32 4, %v899
  %v901 = vrot.slane %v29, %v900
  %v902 = vlaneseq
  %v903 = vshrl.u32 %v902, 7
  %v904 = vsub.s32 4, %v903
  %v905 = vrot.slane %v30, %v904
  %v906 = vlaneseq
  %v907 = vshrl.u32 %v906, 7
  %v908 = vsub.s32 4, %v907
  %v909 = vrot.slane %v31, %v908
  %v910 = vlaneseq
  %v911 = vshrl.u32 %v910, 7
  %v912 = vsub.s32 4, %v911
  %v913 = vrot.slane %v32, %v912
  %v914 = vlaneseq
  %v915 = vshrl.u32 %v914, 7
  %v916 = vsub.s32 4, %v915
  %v917 = vrot.slane %v33, %v916
  %v918 = vlaneseq
  %v919 = vshrl.u32 %v918, 7
  %v920 = vsub.s32 4, %v919
  %v921 = vrot.slane %v34, %v920
  %v922 = vlaneseq
  %v923 = vshrl.u32 %v922, 7
  %v924 = vsub.s32 4, %v923
  %v925 = vrot.slane %v35, %v924
  %v926 = vlaneseq
  %v927 = vshrl.u32 %v926, 7
  %v928 = vsub.s32 4, %v927
  %v929 = vrot.slane %v36, %v928
  %v930 = vlaneseq
  %v931 = vshrl.u32 %v930, 7
  %v932 = vsub.s32 4, %v931
  %v933 = vrot.slane %v37, %v932
  %v934 = vlaneseq
  %v935 = vshrl.u32 %v934, 7
  %v936 = vsub.s32 4, %v935
  %v937 = vrot.slane %v38, %v936
  %v938 = vlaneseq
  %v939 = vshrl.u32 %v938, 7
  %v940 = vsub.s32 4, %v939
  %v941 = vrot.slane %v39, %v940
  %v942 = vlaneseq
  %v943 = vshrl.u32 %v942, 7
  %v944 = vsub.s32 4, %v943
  %v945 = vrot.slane %v40, %v944
  %v946 = vlaneseq
  %v947 = vshrl.u32 %v946, 7
  %v948 = vsub.s32 4, %v947
  %v949 = vrot.slane %v41, %v948
  %v950 = vlaneseq
  %v951 = vshrl.u32 %v950, 7
  %v952 = vsub.s32 4, %v951
  %v953 = vrot.slane %v42, %v952
  %v954 = vlaneseq
  %v955 = vshrl.u32 %v954, 7
  %v956 = vsub.s32 4, %v955
  %v957 = vrot.slane %v43, %v956
  %v958 = vlaneseq
  %v959 = vshrl.u32 %v958, 7
  %v960 = vsub.s32 4, %v959
  %v961 = vrot.slane %v44, %v960
  %v962 = vlaneseq
  %v963 = vshrl.u32 %v962, 7
  %v964 = vsub.s32 4, %v963
  %v965 = vrot.slane %v45, %v964
  %966 = vset.pattern.permute.xlu0 4
  %967 = vperm.xlu0 %966, %v46
  %v968 = vpop.permute.xlu0 %967
  %v970 = vmul.f32 %v841, %v968
  %v971 = vmul.f32 %v845, %v968
  %v972 = vmul.f32 %v849, %v968
  %v973 = vmul.f32 %v853, %v968
  %v974 = vmul.f32 %v857, %v968
  %v975 = vmul.f32 %v861, %v968
  %v976 = vmul.f32 %v865, %v968
  %v977 = vmul.f32 %v869, %v968
  %v978 = vmul.f32 %v873, %v968
  %v979 = vmul.f32 %v877, %v968
  %v980 = vmul.f32 %v881, %v968
  %v981 = vmul.f32 %v885, %v968
  %v982 = vmul.f32 %v889, %v968
  %v983 = vmul.f32 %v893, %v968
  %v984 = vmul.f32 %v897, %v968
  %v985 = vmul.f32 %v901, %v968
  %v986 = vmul.f32 %v905, %v968
  %v987 = vmul.f32 %v909, %v968
  %v988 = vmul.f32 %v913, %v968
  %v989 = vmul.f32 %v917, %v968
  %v990 = vmul.f32 %v921, %v968
  %v991 = vmul.f32 %v925, %v968
  %v992 = vmul.f32 %v929, %v968
  %v993 = vmul.f32 %v933, %v968
  %v994 = vmul.f32 %v937, %v968
  %v995 = vmul.f32 %v941, %v968
  %v996 = vmul.f32 %v945, %v968
  %v997 = vmul.f32 %v949, %v968
  %v998 = vmul.f32 %v953, %v968
  %v999 = vmul.f32 %v957, %v968
  %v1000 = vmul.f32 %v961, %v968
  %v1001 = vmul.f32 %v965, %v968
  %v1002 = vadd.f32 %v806, %v970
  %v1003 = vadd.f32 %v807, %v971
  %v1004 = vadd.f32 %v808, %v972
  %v1005 = vadd.f32 %v809, %v973
  %v1006 = vadd.f32 %v810, %v974
  %v1007 = vadd.f32 %v811, %v975
  %v1008 = vadd.f32 %v812, %v976
  %v1009 = vadd.f32 %v813, %v977
  %v1010 = vadd.f32 %v814, %v978
  %v1011 = vadd.f32 %v815, %v979
  %v1012 = vadd.f32 %v816, %v980
  %v1013 = vadd.f32 %v817, %v981
  %v1014 = vadd.f32 %v818, %v982
  %v1015 = vadd.f32 %v819, %v983
  %v1016 = vadd.f32 %v820, %v984
  %v1017 = vadd.f32 %v821, %v985
  %v1018 = vadd.f32 %v822, %v986
  %v1019 = vadd.f32 %v823, %v987
  %v1020 = vadd.f32 %v824, %v988
  %v1021 = vadd.f32 %v825, %v989
  %v1022 = vadd.f32 %v826, %v990
  %v1023 = vadd.f32 %v827, %v991
  %v1024 = vadd.f32 %v828, %v992
  %v1025 = vadd.f32 %v829, %v993
  %v1026 = vadd.f32 %v830, %v994
  %v1027 = vadd.f32 %v831, %v995
  %v1028 = vadd.f32 %v832, %v996
  %v1029 = vadd.f32 %v833, %v997
  %v1030 = vadd.f32 %v834, %v998
  %v1031 = vadd.f32 %v835, %v999
  %v1032 = vadd.f32 %v836, %v1000
  %v1033 = vadd.f32 %v837, %v1001
  %v1034 = vmax.f32 %v1002, 4.7
  %v1035 = vmax.f32 %v1003, 4.7
  %v1036 = vmax.f32 %v1004, 4.7
  %v1037 = vmax.f32 %v1005, 4.7
  %v1038 = vmax.f32 %v1006, 4.7
  %v1039 = vmax.f32 %v1007, 4.7
  %v1040 = vmax.f32 %v1008, 4.7
  %v1041 = vmax.f32 %v1009, 4.7
  %v1042 = vmax.f32 %v1010, 4.7
  %v1043 = vmax.f32 %v1011, 4.7
  %v1044 = vmax.f32 %v1012, 4.7
  %v1045 = vmax.f32 %v1013, 4.7
  %v1046 = vmax.f32 %v1014, 4.7
  %v1047 = vmax.f32 %v1015, 4.7
  %v1048 = vmax.f32 %v1016, 4.7
  %v1049 = vmax.f32 %v1017, 4.7
  %v1050 = vmax.f32 %v1018, 4.7
  %v1051 = vmax.f32 %v1019, 4.7
  %v1052 = vmax.f32 %v1020, 4.7
  %v1053 = vmax.f32 %v1021, 4.7
  %v1054 = vmax.f32 %v1022, 4.7
  %v1055 = vmax.f32 %v1023, 4.7
  %v1056 = vmax.f32 %v1024, 4.7
  %v1057 = vmax.f32 %v1025, 4.7
  %v1058 = vmax.f32 %v1026, 4.7
  %v1059 = vmax.f32 %v1027, 4.7
  %v1060 = vmax.f32 %v1028, 4.7
  %v1061 = vmax.f32 %v1029, 4.7
  %v1062 = vmax.f32 %v1030, 4.7
  %v1063 = vmax.f32 %v1031, 4.7
  %v1064 = vmax.f32 %v1032, 4.7
  %v1065 = vmax.f32 %v1033, 4.7
  %v1066 = vmin.f32 %v1034, 0.3
  %v1067 = vmin.f32 %v1035, 0.3
  %v1068 = vmin.f32 %v1036, 0.3
  %v1069 = vmin.f32 %v1037, 0.3
  %v1070 = vmin.f32 %v1038, 0.3
  %v1071 = vmin.f32 %v1039, 0.3
  %v1072 = vmin.f32 %v1040, 0.3
  %v1073 = vmin.f32 %v1041, 0.3
  %v1074 = vmin.f32 %v1042, 0.3
  %v1075 = vmin.f32 %v1043, 0.3
  %v1076 = vmin.f32 %v1044, 0.3
  %v1077 = vmin.f32 %v1045, 0.3
  %v1078 = vmin.f32 %v1046, 0.3
  %v1079 = vmin.f32 %v1047, 0.3
  %v1080 = vmin.f32 %v1048, 0.3
  %v1081 = vmin.f32 %v1049, 0.3
  %v1082 = vmin.f32 %v1050, 0.3
  %v1083 = vmin.f32 %v1051, 0.3
  %v1084 = vmin.f32 %v1052, 0.3
  %v1085 = vmin.f32 %v1053, 0.3
  %v1086 = vmin.f32 %v1054, 0.3
  %v1087 = vmin.f32 %v1055, 0.3
  %v1088 = vmin.f32 %v1056, 0.3
  %v1089 = vmin.f32 %v1057, 0.3
  %v1090 = vmin.f32 %v1058, 0.3
  %v1091 = vmin.f32 %v1059, 0.3
  %v1092 = vmin.f32 %v1060, 0.3
  %v1093 = vmin.f32 %v1061, 0.3
  %v1094 = vmin.f32 %v1062, 0.3
  %v1095 = vmin.f32 %v1063, 0.3
  %v1096 = vmin.f32 %v1064, 0.3
  %v1097 = vmin.f32 %v1065, 0.3
  %1098 = vst [vmem:[%s3] sm:$0x1f] %v1066
  %1099 = vst [vmem:[%s3 + $0x8] sm:$0x1f] %v1067
  %1100 = vst [vmem:[%s3 + $0x10] sm:$0x1f] %v1068
  %1101 = vst [vmem:[%s3 + $0x18] sm:$0x1f] %v1069
  %1102 = vst [vmem:[%s3 + $0x20] sm:$0x1f] %v1070
  %1103 = vst [vmem:[%s3 + $0x28] sm:$0x1f] %v1071
  %1104 = vst [vmem:[%s3 + $0x30] sm:$0x1f] %v1072
  %1105 = vst [vmem:[%s3 + $0x38] sm:$0x1f] %v1073
  %1106 = vst [vmem:[%s3 + $0x40] sm:$0x1f] %v1074
  %1107 = vst [vmem:[%s3 + $0x48] sm:$0x1f] %v1075
  %1108 = vst [vmem:[%s3 + $0x50] sm:$0x1f] %v1076
  %1109 = vst [vmem:[%s3 + $0x58] sm:$0x1f] %v1077
  %1110 = vst [vmem:[%s3 + $0x60] sm:$0x1f] %v1078
  %1111 = vst [vmem:[%s3 + $0x68] sm:$0x1f] %v1079
  %1112 = vst [vmem:[%s3 + $0x70] sm:$0x1f] %v1080
  %1113 = vst [vmem:[%s3 + $0x78] sm:$0x1f] %v1081
  %1114 = vst [vmem:[%s3 + $0x80] sm:$0x1f] %v1082
  %1115 = vst [vmem:[%s3 + $0x88] sm:$0x1f] %v1083
  %1116 = vst [vmem:[%s3 + $0x90] sm:$0x1f] %v1084
  %1117 = vst [vmem:[%s3 + $0x98] sm:$0x1f] %v1085
  %1118 = vst [vmem:[%s3 + $0xa0] sm:$0x1f] %v1086
  %1119 = vst [vmem:[%s3 + $0xa8] sm:$0x1f] %v1087
  %1120 = vst [vmem:[%s3 + $0xb0] sm:$0x1f] %v1088
  %1121 = vst [vmem:[%s3 + $0xb8] sm:$0x1f] %v1089
  %1122 = vst [vmem:[%s3 + $0xc0] sm:$0x1f] %v1090
  %1123 = vst [vmem:[%s3 + $0xc8] sm:$0x1f] %v1091
  %1124 = vst [vmem:[%s3 + $0xd0] sm:$0x1f] %v1092
  %1125 = vst [vmem:[%s3 + $0xd8] sm:$0x1f] %v1093
  %1126 = vst [vmem:[%s3 + $0xe0] sm:$0x1f] %v1094
  %1127 = vst [vmem:[%s3 + $0xe8] sm:$0x1f] %v1095
  %1128 = vst [vmem:[%s3 + $0xf0] sm:$0x1f] %v1096
  %1129 = vst [vmem:[%s3 + $0xf8] sm:$0x1f] %v1097
  // Predicated region
  $region14: #{conv_transpose1x1_pad1_clamp.1} parent=0 // pred_check
    _
  $region15: #{conv_transpose1x1_pad1_clamp.1} parent=0 // pred_check_branch
    %1131 = sbr.rel (0) target = $region17
  $region16: #{conv_transpose1x1_pad1_clamp.1} parent=0 // pred_region
    _
  $region17: #{conv_transpose1x1_pad1_clamp.1} parent=0 // pred_fallthru
    _
  // Predicated region
  $region18: #{conv_transpose1x1_pad1_clamp.1} parent=0 // pred_check
    _
  $region19: #{conv_transpose1x1_pad1_clamp.1} parent=0 // pred_check_branch
    %1133 = sbr.rel (0) target = $region21
  $region20: #{conv_transpose1x1_pad1_clamp.1} parent=0 // pred_region
    _
  $region21: #{conv_transpose1x1_pad1_clamp.1} parent=0 // pred_fallthru
    _

</llo_original>
